<compile_context>
chip_gen: v6e
topology: v6e:2x2x1
jax: 0.10.0
libtpu: 0.0.40
codegen_flags: <defaults>
</compile_context>

<pallas_src>
import jax
import jax.numpy as jnp
from jax.experimental import pallas as pl
from jax.experimental.pallas import tpu as pltpu

LANE = 128
SUBLANE = 8


def _round_up(v, m):
    return (v + m - 1) // m * m


def _pad2d(a, rows, cols):
    r, c = a.shape
    return jnp.pad(a, ((0, rows - r), (0, cols - c)))


# ---------------------------------------------------------------------------
# Fused forward kernel (built per static config: layer count, residual flags)
# ---------------------------------------------------------------------------

def _make_fused_kernel(num_layers, use_residual, has_res_transform, out_channels):
    num_norms = num_layers - 2

    def kernel(*refs):
        it = iter(refs)
        a = next(it)[...]                       # (Np, Np)        bf16
        x_f32 = next(it)[...]                   # (Np, Fin_pad)   f32
        if has_res_transform:
            w_res = next(it)[...]               # (Fin_pad, H_pad) bf16
            b_res = next(it)[...]               # (1, H_pad)       f32
        conv_w, conv_b = [], []
        for _ in range(num_layers):
            conv_w.append(next(it)[...])        # (2*fin_pad, fout_pad) bf16
            conv_b.append(next(it)[...])        # (1, fout_pad)         f32
        norm_scale, norm_shift = [], []
        for _ in range(num_norms):
            norm_scale.append(next(it)[...])    # (1, H_pad) f32
            norm_shift.append(next(it)[...])    # (1, H_pad) f32
        out_refs = list(it)                     # num_layers activations + log_probs

        x_bf = x_f32.astype(jnp.bfloat16)

        residual = None
        if use_residual:
            if has_res_transform:
                residual = (jnp.dot(x_bf, w_res, preferred_element_type=jnp.float32)
                            + b_res)
            else:
                residual = x_f32

        def sage(h_bf, w_cat, b):
            # mean-aggregate neighbours, then fused [lin_l | lin_r] projection
            agg = jnp.dot(a, h_bf, preferred_element_type=jnp.float32)
            cat = jnp.concatenate([agg.astype(jnp.bfloat16), h_bf], axis=-1)
            return jnp.dot(cat, w_cat, preferred_element_type=jnp.float32) + b

        # layer 0: conv -> relu (dropout is identity in eval mode)
        h = jnp.maximum(sage(x_bf, conv_w[0], conv_b[0]), 0.0)
        out_refs[0][...] = h
        h_bf = h.astype(jnp.bfloat16)

        # middle layers: conv -> BatchNorm(eval, folded) -> relu -> (+ residual)
        for li in range(1, num_layers - 1):
            h = sage(h_bf, conv_w[li], conv_b[li])
            h = h * norm_scale[li - 1] + norm_shift[li - 1]
            h = jnp.maximum(h, 0.0)
            if use_residual:
                h = h + residual
            out_refs[li][...] = h
            h_bf = h.astype(jnp.bfloat16)

        # last layer: plain conv
        logits = sage(h_bf, conv_w[-1], conv_b[-1])
        out_refs[num_layers - 1][...] = logits

        # fused log_softmax over the real out_channels only (padded lanes masked)
        col = jax.lax.broadcasted_iota(jnp.int32, logits.shape, 1)
        masked = jnp.where(col < out_channels, logits, jnp.float32(-1e30))
        m = jnp.max(masked, axis=-1, keepdims=True)
        z = masked - m
        lse = jnp.log(jnp.sum(jnp.exp(z), axis=-1, keepdims=True))
        out_refs[num_layers][...] = z - lse

    return kernel


# ---------------------------------------------------------------------------
# Parameters (real shapes) + packing (padded / bf16 / fused W_cat / folded BN)
# ---------------------------------------------------------------------------

def _glorot(key, fan_in, fan_out):
    lim = (6.0 / (fan_in + fan_out)) ** 0.5
    return jax.random.uniform(key, (fan_in, fan_out), jnp.float32, -lim, lim)


def init_params(key, in_channels, hidden_channels, out_channels, num_layers):
    dims = [in_channels] + [hidden_channels] * (num_layers - 1) + [out_channels]
    params = {"convs": [], "norms": [], "residual": None}
    for li in range(num_layers):
        f_in, f_out = dims[li], dims[li + 1]
        key, k1, k2 = jax.random.split(key, 3)
        params["convs"].append({
            "wl": _glorot(k1, f_in, f_out),            # lin_l (aggregated neighbours)
            "wr": _glorot(k2, f_in, f_out),            # lin_r (root node)
            "b": jnp.zeros((f_out,), jnp.float32),     # lin_l bias
        })
    for _ in range(num_layers - 2):
        params["norms"].append({
            "gamma": jnp.ones((hidden_channels,), jnp.float32),
            "beta": jnp.zeros((hidden_channels,), jnp.float32),
            "mean": jnp.zeros((hidden_channels,), jnp.float32),
            "var": jnp.ones((hidden_channels,), jnp.float32),
            "eps": 1e-5,
        })
    if in_channels != hidden_channels:
        key, k = jax.random.split(key)
        params["residual"] = {
            "w": _glorot(k, in_channels, hidden_channels),
            "b": jnp.zeros((hidden_channels,), jnp.float32),
        }
    return params


def pack_params(params, in_channels, hidden_channels, out_channels, num_layers):
    dims = [in_channels] + [hidden_channels] * (num_layers - 1) + [out_channels]
    pdims = [_round_up(d, LANE) for d in dims]
    packed = {"convs": [], "norms": [], "residual": None, "dims": dims, "pdims": pdims}
    for li in range(num_layers):
        f_in, f_out = dims[li], dims[li + 1]
        fin_p, fout_p = pdims[li], pdims[li + 1]
        c = params["convs"][li]
        w_cat = jnp.zeros((2 * fin_p, fout_p), jnp.float32)
        w_cat = w_cat.at[:f_in, :f_out].set(c["wl"])
        w_cat = w_cat.at[fin_p:fin_p + f_in, :f_out].set(c["wr"])
        b = jnp.zeros((1, fout_p), jnp.float32).at[0, :f_out].set(c["b"])
        packed["convs"].append({"w_cat": w_cat.astype(jnp.bfloat16), "b": b})
    h_p = pdims[1]
    for n in params["norms"]:
        scale = n["gamma"] / jnp.sqrt(n["var"] + n["eps"])
        shift = n["beta"] - n["mean"] * scale
        s = jnp.ones((1, h_p), jnp.float32).at[0, :hidden_channels].set(scale)
        t = jnp.zeros((1, h_p), jnp.float32).at[0, :hidden_channels].set(shift)
        packed["norms"].append({"scale": s, "shift": t})
    if params["residual"] is not None:
        fin_p = pdims[0]
        w = jnp.zeros((fin_p, h_p), jnp.float32).at[
            :in_channels, :hidden_channels].set(params["residual"]["w"])
        b = jnp.zeros((1, h_p), jnp.float32).at[0, :hidden_channels].set(
            params["residual"]["b"])
        packed["residual"] = {"w": w.astype(jnp.bfloat16), "b": b}
    return packed


# ---------------------------------------------------------------------------
# Graph prep + forward wrapper
# ---------------------------------------------------------------------------

def build_dense_adjacency(edge_index, num_nodes):
    # PyG mean aggregation: message src -> dst, mean over incoming edges per dst.
    src, dst = edge_index[0], edge_index[1]
    a = jnp.zeros((num_nodes, num_nodes), jnp.float32)
    a = a.at[dst, src].add(1.0)
    deg = jnp.sum(a, axis=1, keepdims=True)
    return a / jnp.maximum(deg, 1.0)


def graphsage_forward(packed, x, a_norm, use_residual=True):
    num_layers = len(packed["convs"])
    dims, pdims = packed["dims"], packed["pdims"]
    n = x.shape[0]
    n_pad = _round_up(n, SUBLANE)
    has_res_transform = packed["residual"] is not None

    a_p = _pad2d(a_norm.astype(jnp.float32), n_pad, n_pad).astype(jnp.bfloat16)
    x_p = _pad2d(x.astype(jnp.float32), n_pad, pdims[0])

    inputs = [a_p, x_p]
    if has_res_transform:
        inputs += [packed["residual"]["w"], packed["residual"]["b"]]
    for c in packed["convs"]:
        inputs += [c["w_cat"], c["b"]]
    for nm in packed["norms"]:
        inputs += [nm["scale"], nm["shift"]]

    h_pad, c_pad = pdims[1], pdims[-1]
    out_shape = tuple(
        [jax.ShapeDtypeStruct((n_pad, h_pad), jnp.float32)] * (num_layers - 1)
        + [jax.ShapeDtypeStruct((n_pad, c_pad), jnp.float32)]    # last conv output
        + [jax.ShapeDtypeStruct((n_pad, c_pad), jnp.float32)])   # log-probs

    kernel = _make_fused_kernel(num_layers, use_residual, has_res_transform, dims[-1])

    vmem_spec = pl.BlockSpec(memory_space=pltpu.MemorySpace.VMEM)
    outs = pl.pallas_call(
        kernel,
        out_shape=out_shape,
        in_specs=[vmem_spec] * len(inputs),
        out_specs=tuple([vmem_spec] * len(out_shape)),
    )(*inputs)

    activations = [outs[i][:n, :dims[i + 1]] for i in range(num_layers)]
    log_probs = outs[num_layers][:n, :dims[-1]]
    return log_probs, activations


# ---------------------------------------------------------------------------
# Pure-JAX f32 reference (eval-mode semantics of the PyTorch module)
# ---------------------------------------------------------------------------

def reference_forward(params, x, a_norm, use_residual=True):
    acts = []
    residual = x
    if params["residual"] is not None:
        residual = x @ params["residual"]["w"] + params["residual"]["b"]

    def sage(h, c):
        return (a_norm @ h) @ c["wl"] + h @ c["wr"] + c["b"]

    h = jnp.maximum(sage(x, params["convs"][0]), 0.0)
    acts.append(h)
    for conv, n in zip(params["convs"][1:-1], params["norms"]):
        h = sage(h, conv)
        scale = n["gamma"] / jnp.sqrt(n["var"] + n["eps"])
        shift = n["beta"] - n["mean"] * scale
        h = jnp.maximum(h * scale + shift, 0.0)
        if use_residual:
            h = h + residual
        acts.append(h)
    h = sage(h, params["convs"][-1])
    acts.append(h)
    return jax.nn.log_softmax(h, axis=-1), acts


# ---------------------------------------------------------------------------
# Main
# ---------------------------------------------------------------------------

if __name__ == "__main__":
    key = jax.random.PRNGKey(0)

    num_nodes = 16
    num_edges = 48
    in_channels = 8
    hidden_channels = 32
    out_channels = 4
    num_layers = 3          # -> 3 SAGEConv layers, 1 BatchNorm
    # dropout = 0.5 -> identity in eval mode

    key, kx, ke, kp = jax.random.split(key, 4)
    x = jax.random.normal(kx, (num_nodes, in_channels), jnp.float32)
    edge_index = jax.random.randint(ke, (2, num_edges), 0, num_nodes, jnp.int32)

    a_norm = build_dense_adjacency(edge_index, num_nodes)
    params = init_params(kp, in_channels, hidden_channels, out_channels, num_layers)
    packed = pack_params(params, in_channels, hidden_channels, out_channels, num_layers)

    log_probs, activations = graphsage_forward(packed, x, a_norm, use_residual=True)
    log_probs = jax.block_until_ready(log_probs)
    for act in activations:
        jax.block_until_ready(act)

    assert log_probs.shape == (num_nodes, out_channels)
    assert len(activations) == num_layers
    assert activations[0].shape == (num_nodes, hidden_channels)
    assert activations[-1].shape == (num_nodes, out_channels)
    # rows of exp(log_softmax) sum to ~1
    assert bool(jnp.allclose(jnp.sum(jnp.exp(log_probs), axis=-1), 1.0, atol=1e-4))

    # compare with the pure-JAX f32 reference (bf16 MXU inputs -> loose tolerance)
    ref_lp, ref_acts = reference_forward(params, x, a_norm, use_residual=True)
    assert bool(jnp.max(jnp.abs(log_probs - ref_lp)) < 0.3)
    for a_k, a_r in zip(activations, ref_acts):
        assert bool(jnp.max(jnp.abs(a_k - a_r)) < 0.3)

    print("KERNEL_OK")
</pallas_src>

<mosaic_0001>
module attributes {stable_mosaic.version = 11 : i64} {
  func.func @kernel(%arg0: memref<16x16xbf16, #tpu.memory_space<vmem>>, %arg1: memref<16x128xf32, #tpu.memory_space<vmem>>, %arg2: memref<128x128xbf16, #tpu.memory_space<vmem>>, %arg3: memref<1x128xf32, #tpu.memory_space<vmem>>, %arg4: memref<256x128xbf16, #tpu.memory_space<vmem>>, %arg5: memref<1x128xf32, #tpu.memory_space<vmem>>, %arg6: memref<256x128xbf16, #tpu.memory_space<vmem>>, %arg7: memref<1x128xf32, #tpu.memory_space<vmem>>, %arg8: memref<256x128xbf16, #tpu.memory_space<vmem>>, %arg9: memref<1x128xf32, #tpu.memory_space<vmem>>, %arg10: memref<1x128xf32, #tpu.memory_space<vmem>>, %arg11: memref<1x128xf32, #tpu.memory_space<vmem>>, %arg12: memref<16x128xf32, #tpu.memory_space<vmem>>, %arg13: memref<16x128xf32, #tpu.memory_space<vmem>>, %arg14: memref<16x128xf32, #tpu.memory_space<vmem>>, %arg15: memref<16x128xf32, #tpu.memory_space<vmem>>) attributes {dimension_semantics = [], scalar_prefetch = 0 : i64, scratch_operands = 0 : i64, tpu.core_type = #tpu.core_type<tc>} {
    %c0 = arith.constant 0 : index
    %c0_0 = arith.constant 0 : index
    %0 = vector.load %arg0[%c0, %c0_0] : memref<16x16xbf16, #tpu.memory_space<vmem>>, vector<16x16xbf16>
    %c0_1 = arith.constant 0 : index
    %c0_2 = arith.constant 0 : index
    %1 = vector.load %arg1[%c0_1, %c0_2] : memref<16x128xf32, #tpu.memory_space<vmem>>, vector<16x128xf32>
    %c0_3 = arith.constant 0 : index
    %c0_4 = arith.constant 0 : index
    %2 = vector.load %arg2[%c0_3, %c0_4] : memref<128x128xbf16, #tpu.memory_space<vmem>>, vector<128x128xbf16>
    %c0_5 = arith.constant 0 : index
    %c0_6 = arith.constant 0 : index
    %3 = vector.load %arg3[%c0_5, %c0_6] : memref<1x128xf32, #tpu.memory_space<vmem>>, vector<1x128xf32>
    %c0_7 = arith.constant 0 : index
    %c0_8 = arith.constant 0 : index
    %4 = vector.load %arg4[%c0_7, %c0_8] : memref<256x128xbf16, #tpu.memory_space<vmem>>, vector<256x128xbf16>
    %c0_9 = arith.constant 0 : index
    %c0_10 = arith.constant 0 : index
    %5 = vector.load %arg5[%c0_9, %c0_10] : memref<1x128xf32, #tpu.memory_space<vmem>>, vector<1x128xf32>
    %c0_11 = arith.constant 0 : index
    %c0_12 = arith.constant 0 : index
    %6 = vector.load %arg6[%c0_11, %c0_12] : memref<256x128xbf16, #tpu.memory_space<vmem>>, vector<256x128xbf16>
    %c0_13 = arith.constant 0 : index
    %c0_14 = arith.constant 0 : index
    %7 = vector.load %arg7[%c0_13, %c0_14] : memref<1x128xf32, #tpu.memory_space<vmem>>, vector<1x128xf32>
    %c0_15 = arith.constant 0 : index
    %c0_16 = arith.constant 0 : index
    %8 = vector.load %arg8[%c0_15, %c0_16] : memref<256x128xbf16, #tpu.memory_space<vmem>>, vector<256x128xbf16>
    %c0_17 = arith.constant 0 : index
    %c0_18 = arith.constant 0 : index
    %9 = vector.load %arg9[%c0_17, %c0_18] : memref<1x128xf32, #tpu.memory_space<vmem>>, vector<1x128xf32>
    %c0_19 = arith.constant 0 : index
    %c0_20 = arith.constant 0 : index
    %10 = vector.load %arg10[%c0_19, %c0_20] : memref<1x128xf32, #tpu.memory_space<vmem>>, vector<1x128xf32>
    %c0_21 = arith.constant 0 : index
    %c0_22 = arith.constant 0 : index
    %11 = vector.load %arg11[%c0_21, %c0_22] : memref<1x128xf32, #tpu.memory_space<vmem>>, vector<1x128xf32>
    %12 = arith.truncf %1 : vector<16x128xf32> to vector<16x128xbf16>
    %cst = arith.constant dense<0.000000e+00> : vector<16x128xf32>
    %13 = tpu.matmul %12, %2, %cst {dimension_numbers = #tpu.dot_dimension_numbers<[1], [0], [0], [1], [0, 0, 1, 1], [], []>} : vector<16x128xbf16>, vector<128x128xbf16>, vector<16x128xf32> -> vector<16x128xf32>
    %14 = vector.broadcast %3 : vector<1x128xf32> to vector<16x128xf32>
    %15 = arith.addf %13, %14 : vector<16x128xf32>
    %cst_23 = arith.constant dense<0.000000e+00> : vector<16x128xf32>
    %16 = tpu.matmul %0, %12, %cst_23 {dimension_numbers = #tpu.dot_dimension_numbers<[1], [0], [0], [1], [0, 0, 1, 1], [], []>} : vector<16x16xbf16>, vector<16x128xbf16>, vector<16x128xf32> -> vector<16x128xf32>
    %17 = arith.truncf %16 : vector<16x128xf32> to vector<16x128xbf16>
    %18 = tpu.concatenate %17, %12 in 1 : vector<16x128xbf16>, vector<16x128xbf16> -> vector<16x256xbf16>
    %cst_24 = arith.constant dense<0.000000e+00> : vector<16x128xf32>
    %19 = tpu.matmul %18, %4, %cst_24 {dimension_numbers = #tpu.dot_dimension_numbers<[1], [0], [0], [1], [0, 0, 1, 1], [], []>} : vector<16x256xbf16>, vector<256x128xbf16>, vector<16x128xf32> -> vector<16x128xf32>
    %20 = vector.broadcast %5 : vector<1x128xf32> to vector<16x128xf32>
    %21 = arith.addf %19, %20 : vector<16x128xf32>
    %cst_25 = arith.constant 0.000000e+00 : f32
    %22 = vector.broadcast %cst_25 : f32 to vector<16x128xf32>
    %23 = arith.maximumf %21, %22 : vector<16x128xf32>
    %c0_26 = arith.constant 0 : index
    %c0_27 = arith.constant 0 : index
    %24 = vector.load %arg12[%c0_26, %c0_27] : memref<16x128xf32, #tpu.memory_space<vmem>>, vector<16x128xf32>
    tpu.vector_store %arg12[%c0_26, %c0_27], %23 {strides = array<i32>} : memref<16x128xf32, #tpu.memory_space<vmem>>, vector<16x128xf32>,
    %25 = arith.truncf %23 : vector<16x128xf32> to vector<16x128xbf16>
    %cst_28 = arith.constant dense<0.000000e+00> : vector<16x128xf32>
    %26 = tpu.matmul %0, %25, %cst_28 {dimension_numbers = #tpu.dot_dimension_numbers<[1], [0], [0], [1], [0, 0, 1, 1], [], []>} : vector<16x16xbf16>, vector<16x128xbf16>, vector<16x128xf32> -> vector<16x128xf32>
    %27 = arith.truncf %26 : vector<16x128xf32> to vector<16x128xbf16>
    %28 = tpu.concatenate %27, %25 in 1 : vector<16x128xbf16>, vector<16x128xbf16> -> vector<16x256xbf16>
    %cst_29 = arith.constant dense<0.000000e+00> : vector<16x128xf32>
    %29 = tpu.matmul %28, %6, %cst_29 {dimension_numbers = #tpu.dot_dimension_numbers<[1], [0], [0], [1], [0, 0, 1, 1], [], []>} : vector<16x256xbf16>, vector<256x128xbf16>, vector<16x128xf32> -> vector<16x128xf32>
    %30 = vector.broadcast %7 : vector<1x128xf32> to vector<16x128xf32>
    %31 = arith.addf %29, %30 : vector<16x128xf32>
    %32 = vector.broadcast %10 : vector<1x128xf32> to vector<16x128xf32>
    %33 = arith.mulf %31, %32 : vector<16x128xf32>
    %34 = vector.broadcast %11 : vector<1x128xf32> to vector<16x128xf32>
    %35 = arith.addf %33, %34 : vector<16x128xf32>
    %cst_30 = arith.constant 0.000000e+00 : f32
    %36 = vector.broadcast %cst_30 : f32 to vector<16x128xf32>
    %37 = arith.maximumf %35, %36 : vector<16x128xf32>
    %38 = arith.addf %37, %15 : vector<16x128xf32>
    %c0_31 = arith.constant 0 : index
    %c0_32 = arith.constant 0 : index
    %39 = vector.load %arg13[%c0_31, %c0_32] : memref<16x128xf32, #tpu.memory_space<vmem>>, vector<16x128xf32>
    tpu.vector_store %arg13[%c0_31, %c0_32], %38 {strides = array<i32>} : memref<16x128xf32, #tpu.memory_space<vmem>>, vector<16x128xf32>,
    %40 = arith.truncf %38 : vector<16x128xf32> to vector<16x128xbf16>
    %cst_33 = arith.constant dense<0.000000e+00> : vector<16x128xf32>
    %41 = tpu.matmul %0, %40, %cst_33 {dimension_numbers = #tpu.dot_dimension_numbers<[1], [0], [0], [1], [0, 0, 1, 1], [], []>} : vector<16x16xbf16>, vector<16x128xbf16>, vector<16x128xf32> -> vector<16x128xf32>
    %42 = arith.truncf %41 : vector<16x128xf32> to vector<16x128xbf16>
    %43 = tpu.concatenate %42, %40 in 1 : vector<16x128xbf16>, vector<16x128xbf16> -> vector<16x256xbf16>
    %cst_34 = arith.constant dense<0.000000e+00> : vector<16x128xf32>
    %44 = tpu.matmul %43, %8, %cst_34 {dimension_numbers = #tpu.dot_dimension_numbers<[1], [0], [0], [1], [0, 0, 1, 1], [], []>} : vector<16x256xbf16>, vector<256x128xbf16>, vector<16x128xf32> -> vector<16x128xf32>
    %45 = vector.broadcast %9 : vector<1x128xf32> to vector<16x128xf32>
    %46 = arith.addf %44, %45 : vector<16x128xf32>
    %c0_35 = arith.constant 0 : index
    %c0_36 = arith.constant 0 : index
    %47 = vector.load %arg14[%c0_35, %c0_36] : memref<16x128xf32, #tpu.memory_space<vmem>>, vector<16x128xf32>
    tpu.vector_store %arg14[%c0_35, %c0_36], %46 {strides = array<i32>} : memref<16x128xf32, #tpu.memory_space<vmem>>, vector<16x128xf32>,
    %48 = tpu.iota {dimensions = array<i32: 1>} : vector<16x128xi32>
    %c4_i32 = arith.constant 4 : i32
    %49 = vector.broadcast %c4_i32 : i32 to vector<16x128xi32>
    %50 = arith.cmpi slt, %48, %49 : vector<16x128xi32>
    %cst_37 = arith.constant -1.000000e+30 : f32
    %51 = vector.broadcast %cst_37 : f32 to vector<16x128xf32>
    %52 = arith.select %50, %46, %51 : vector<16x128xi1>, vector<16x128xf32>
    %cst_38 = arith.constant dense<0xFF800000> : vector<16xf32>
    %53 = vector.multi_reduction <maximumf>, %52, %cst_38 [1] : vector<16x128xf32> to vector<16xf32>
    %54 = vector.shape_cast %53 : vector<16xf32> to vector<16x1xf32>
    %55 = vector.broadcast %54 : vector<16x1xf32> to vector<16x128xf32>
    %56 = arith.subf %52, %55 : vector<16x128xf32>
    %57 = math.exp %56 : vector<16x128xf32>
    %cst_39 = arith.constant dense<0.000000e+00> : vector<16xf32>
    %58 = vector.multi_reduction <add>, %57, %cst_39 [1] : vector<16x128xf32> to vector<16xf32>
    %59 = vector.shape_cast %58 : vector<16xf32> to vector<16x1xf32>
    %60 = math.log %59 : vector<16x1xf32>
    %61 = vector.broadcast %60 : vector<16x1xf32> to vector<16x128xf32>
    %62 = arith.subf %56, %61 : vector<16x128xf32>
    %c0_40 = arith.constant 0 : index
    %c0_41 = arith.constant 0 : index
    %63 = vector.load %arg15[%c0_40, %c0_41] : memref<16x128xf32, #tpu.memory_space<vmem>>, vector<16x128xf32>
    tpu.vector_store %arg15[%c0_40, %c0_41], %62 {strides = array<i32>} : memref<16x128xf32, #tpu.memory_space<vmem>>, vector<16x128xf32>,
    return
  }
}

</mosaic_0001>

<llo_original>
// kernel: tpu_custom_call.1
$region0: #{tpu_custom_call.1}
  #allocation0 [shape = 'u32[]', space=smem, size = 0x4, offset = 0x4, fixed_abs, tag = 'smem constant byte address 0x4 - core index']
  #allocation1 [shape = 'u32[144,128]{1,0:T(1,128)}', space=vmem, size = 0x12000, scoped, tag = 'internal scratch']
  %s0 = inlined_call_operand.hbm [shape: bf16[16,16], index: 0, kind: input, shape index: {}]
  %s1 = inlined_call_operand.hbm [shape: f32[16,128], index: 1, kind: input, shape index: {}]
  %s2 = inlined_call_operand.hbm [shape: bf16[128,128], index: 2, kind: input, shape index: {}]
  %s3 = inlined_call_operand.vmem [shape: f32[1,128], index: 3, kind: input, shape index: {}]
  %s4 = inlined_call_operand.hbm [shape: bf16[256,128], index: 4, kind: input, shape index: {}]
  %s5 = inlined_call_operand.vmem [shape: f32[1,128], index: 5, kind: input, shape index: {}]
  %s6 = inlined_call_operand.hbm [shape: bf16[256,128], index: 6, kind: input, shape index: {}]
  %s7 = inlined_call_operand.vmem [shape: f32[1,128], index: 7, kind: input, shape index: {}]
  %s8 = inlined_call_operand.hbm [shape: bf16[256,128], index: 8, kind: input, shape index: {}]
  %s9 = inlined_call_operand.vmem [shape: f32[1,128], index: 9, kind: input, shape index: {}]
  %s10 = inlined_call_operand.vmem [shape: f32[1,128], index: 10, kind: input, shape index: {}]
  %s11 = inlined_call_operand.vmem [shape: f32[1,128], index: 11, kind: input, shape index: {}]
  %s12 = inlined_call_operand.hbm [shape: f32[16,128], index: 12, kind: output, shape index: {0}]
  %s13 = inlined_call_operand.hbm [shape: f32[16,128], index: 13, kind: output, shape index: {1}]
  %s14 = inlined_call_operand.hbm [shape: f32[16,128], index: 14, kind: output, shape index: {2}]
  %s15 = inlined_call_operand.hbm [shape: f32[16,128], index: 15, kind: output, shape index: {3}]
  %16 = xla_tuple %s12, %s13, %s14, %s15
  %s17 = sld [smem:[#allocation0]]
  $region106: #{tpu_custom_call.1} parent=0
    _
  %s19 = ssub.s32 1, %s17
  %s20 = scalar_select 0, %s19, %s17
  $region1: #{tpu_custom_call.1} parent=0
    #allocation2 [shape = 'u8[4096]{0}', space=vmem, size = 0x1000, scoped, tag = 'input window, operand 0, single buffered']
    #allocation3 [shape = 's32[1]{0}', space=sflag, size = 0x4, scoped, tag = 'scoped memory for tpu_custom_call.1']
    #allocation4 [shape = 's32[1]{0}', space=sflag, size = 0x4, scoped, tag = 'scoped memory for tpu_custom_call.1']
    #allocation5 [shape = 'u8[8192]{0}', space=vmem, size = 0x2000, scoped, tag = 'input window, operand 1, single buffered']
    #allocation6 [shape = 's32[1]{0}', space=sflag, size = 0x4, scoped, tag = 'scoped memory for tpu_custom_call.1']
    #allocation7 [shape = 'u8[32768]{0}', space=vmem, size = 0x8000, scoped, tag = 'input window, operand 2, single buffered']
    #allocation8 [shape = 'u8[65536]{0}', space=vmem, size = 0x10000, scoped, tag = 'input window, operand 4, single buffered']
    #allocation9 [shape = 's32[1]{0}', space=sflag, size = 0x4, scoped, tag = 'scoped memory for tpu_custom_call.1']
    #allocation10 [shape = 'u8[65536]{0}', space=vmem, size = 0x10000, scoped, tag = 'input window, operand 6, single buffered']
    #allocation11 [shape = 'u8[65536]{0}', space=vmem, size = 0x10000, scoped, tag = 'input window, operand 8, single buffered']
    #allocation12 [shape = 's32[1]{0}', space=sflag, size = 0x4, scoped, tag = 'scoped memory for tpu_custom_call.1']
    #allocation13 [shape = 'u8[8192]{0}', space=vmem, size = 0x2000, scoped, tag = 'output window, operand 0, single buffered']
    #allocation14 [shape = 'u8[8192]{0}', space=vmem, size = 0x2000, scoped, tag = 'output window, operand 1, single buffered']
    #allocation15 [shape = 's32[1]{0}', space=sflag, size = 0x4, scoped, tag = 'scoped memory for tpu_custom_call.1']
    #allocation16 [shape = 'u8[8192]{0}', space=vmem, size = 0x2000, scoped, tag = 'output window, operand 2, single buffered']
    #allocation17 [shape = 'u8[8192]{0}', space=vmem, size = 0x2000, scoped, tag = 'output window, operand 3, single buffered']
    #allocation18 [shape = 's32[1]{0}', space=sflag, size = 0x4, scoped, tag = 'scoped memory for tpu_custom_call.1']
    %21 = vsyncpa [#allocation3], 0
    %22 = vsyncpa [#allocation6], 0
    %23 = vsyncpa [#allocation9], 0
    %24 = vsyncpa [#allocation12], 0
    %25 = vsyncpa [#allocation4], 0
    %26 = vsyncpa [#allocation15], 0
    %27 = vsyncpa [#allocation18], 0
    // Predicated region
    $region2: #{tpu_custom_call.1} parent=1 // pred_check
      _
    $region3: #{tpu_custom_call.1} parent=1 // pred_check_branch
      %29 = sbr.rel (0) target = $region5
    $region4: #{tpu_custom_call.1} parent=1 // pred_region
      %s31 = ssub.s32 128, 128
      %32 = vsyncadd [#allocation3], %s31
      %s33 = sshll.u32 [#allocation2], 4
      %s34 = int_to_ptr.vmem [resolvable:$true] %s33
      %39 = dma.hbm_to_vmem [thread:$0]  %s0, 128, %s34, [#allocation3], 64, 64, 4
    $region5: #{tpu_custom_call.1} parent=1 // pred_fallthru
      _
    // Predicated region
    $region6: #{tpu_custom_call.1} parent=1 // pred_check
      _
    $region7: #{tpu_custom_call.1} parent=1 // pred_check_branch
      %41 = sbr.rel (0) target = $region9
    $region8: #{tpu_custom_call.1} parent=1 // pred_region
      %s43 = ssub.s32 256, 256
      %44 = vsyncadd [#allocation6], %s43
      %s45 = sshll.u32 [#allocation5], 4
      %s46 = int_to_ptr.vmem [resolvable:$true] %s45
      %51 = dma.hbm_to_vmem [thread:$0]  %s1, 256, %s46, [#allocation6], 128, 128, 8
    $region9: #{tpu_custom_call.1} parent=1 // pred_fallthru
      _
    // Predicated region
    $region10: #{tpu_custom_call.1} parent=1 // pred_check
      _
    $region11: #{tpu_custom_call.1} parent=1 // pred_check_branch
      %53 = sbr.rel (0) target = $region13
    $region12: #{tpu_custom_call.1} parent=1 // pred_region
      %s55 = ssub.s32 1024, 1024
      %56 = vsyncadd [#allocation6], %s55
      %s57 = sshll.u32 [#allocation7], 4
      %s58 = int_to_ptr.vmem [resolvable:$true] %s57
      %63 = dma.hbm_to_vmem [thread:$0]  %s2, 1024, %s58, [#allocation6], 64, 64, 4
    $region13: #{tpu_custom_call.1} parent=1 // pred_fallthru
      _
    // Predicated region
    $region14: #{tpu_custom_call.1} parent=1 // pred_check
      _
    $region15: #{tpu_custom_call.1} parent=1 // pred_check_branch
      %65 = sbr.rel (0) target = $region17
    $region16: #{tpu_custom_call.1} parent=1 // pred_region
      _
    $region17: #{tpu_custom_call.1} parent=1 // pred_fallthru
      _
    // Predicated region
    $region18: #{tpu_custom_call.1} parent=1 // pred_check
      _
    $region19: #{tpu_custom_call.1} parent=1 // pred_check_branch
      %67 = sbr.rel (0) target = $region21
    $region20: #{tpu_custom_call.1} parent=1 // pred_region
      %s69 = ssub.s32 2048, 2048
      %70 = vsyncadd [#allocation9], %s69
      %s71 = sshll.u32 [#allocation8], 4
      %s72 = int_to_ptr.vmem [resolvable:$true] %s71
      %77 = dma.hbm_to_vmem [thread:$0]  %s4, 2048, %s72, [#allocation9], 64, 64, 4
    $region21: #{tpu_custom_call.1} parent=1 // pred_fallthru
      _
    // Predicated region
    $region22: #{tpu_custom_call.1} parent=1 // pred_check
      _
    $region23: #{tpu_custom_call.1} parent=1 // pred_check_branch
      %79 = sbr.rel (0) target = $region25
    $region24: #{tpu_custom_call.1} parent=1 // pred_region
      _
    $region25: #{tpu_custom_call.1} parent=1 // pred_fallthru
      _
    // Predicated region
    $region26: #{tpu_custom_call.1} parent=1 // pred_check
      _
    $region27: #{tpu_custom_call.1} parent=1 // pred_check_branch
      %81 = sbr.rel (0) target = $region29
    $region28: #{tpu_custom_call.1} parent=1 // pred_region
      %s83 = ssub.s32 2048, 2048
      %84 = vsyncadd [#allocation9], %s83
      %s85 = sshll.u32 [#allocation10], 4
      %s86 = int_to_ptr.vmem [resolvable:$true] %s85
      %91 = dma.hbm_to_vmem [thread:$0]  %s6, 2048, %s86, [#allocation9], 64, 64, 4
    $region29: #{tpu_custom_call.1} parent=1 // pred_fallthru
      _
    // Predicated region
    $region30: #{tpu_custom_call.1} parent=1 // pred_check
      _
    $region31: #{tpu_custom_call.1} parent=1 // pred_check_branch
      %93 = sbr.rel (0) target = $region33
    $region32: #{tpu_custom_call.1} parent=1 // pred_region
      _
    $region33: #{tpu_custom_call.1} parent=1 // pred_fallthru
      _
    // Predicated region
    $region34: #{tpu_custom_call.1} parent=1 // pred_check
      _
    $region35: #{tpu_custom_call.1} parent=1 // pred_check_branch
      %95 = sbr.rel (0) target = $region37
    $region36: #{tpu_custom_call.1} parent=1 // pred_region
      %s97 = ssub.s32 2048, 2048
      %98 = vsyncadd [#allocation12], %s97
      %s99 = sshll.u32 [#allocation11], 4
      %s100 = int_to_ptr.vmem [resolvable:$true] %s99
      %105 = dma.hbm_to_vmem [thread:$0]  %s8, 2048, %s100, [#allocation12], 64, 64, 4
    $region37: #{tpu_custom_call.1} parent=1 // pred_fallthru
      _
    // Predicated region
    $region38: #{tpu_custom_call.1} parent=1 // pred_check
      _
    $region39: #{tpu_custom_call.1} parent=1 // pred_check_branch
      %107 = sbr.rel (0) target = $region41
    $region40: #{tpu_custom_call.1} parent=1 // pred_region
      _
    $region41: #{tpu_custom_call.1} parent=1 // pred_fallthru
      _
    // Predicated region
    $region42: #{tpu_custom_call.1} parent=1 // pred_check
      _
    $region43: #{tpu_custom_call.1} parent=1 // pred_check_branch
      %109 = sbr.rel (0) target = $region45
    $region44: #{tpu_custom_call.1} parent=1 // pred_region
      _
    $region45: #{tpu_custom_call.1} parent=1 // pred_fallthru
      _
    // Predicated region
    $region46: #{tpu_custom_call.1} parent=1 // pred_check
      _
    $region47: #{tpu_custom_call.1} parent=1 // pred_check_branch
      %111 = sbr.rel (0) target = $region49
    $region48: #{tpu_custom_call.1} parent=1 // pred_region
      _
    $region49: #{tpu_custom_call.1} parent=1 // pred_fallthru
      _
    // Predicated region
    $region50: #{tpu_custom_call.1} parent=1 // pred_check
      _
    $region51: #{tpu_custom_call.1} parent=1 // pred_check_branch
      %113 = sbr.rel (0) target = $region53
    $region52: #{tpu_custom_call.1} parent=1 // pred_region
      %114 = dma.done [#allocation3], 128
    $region53: #{tpu_custom_call.1} parent=1 // pred_fallthru
      _
    // Predicated region
    $region54: #{tpu_custom_call.1} parent=1 // pred_check
      _
    $region55: #{tpu_custom_call.1} parent=1 // pred_check_branch
      %116 = sbr.rel (0) target = $region57
    $region56: #{tpu_custom_call.1} parent=1 // pred_region
      %117 = dma.done [#allocation6], 256
    $region57: #{tpu_custom_call.1} parent=1 // pred_fallthru
      _
    // Predicated region
    $region58: #{tpu_custom_call.1} parent=1 // pred_check
      _
    $region59: #{tpu_custom_call.1} parent=1 // pred_check_branch
      %119 = sbr.rel (0) target = $region61
    $region60: #{tpu_custom_call.1} parent=1 // pred_region
      %120 = dma.done [#allocation6], 1024
    $region61: #{tpu_custom_call.1} parent=1 // pred_fallthru
      _
    // Predicated region
    $region62: #{tpu_custom_call.1} parent=1 // pred_check
      _
    $region63: #{tpu_custom_call.1} parent=1 // pred_check_branch
      %122 = sbr.rel (0) target = $region65
    $region64: #{tpu_custom_call.1} parent=1 // pred_region
      %123 = dma.done [#allocation9], 2048
    $region65: #{tpu_custom_call.1} parent=1 // pred_fallthru
      _
    // Predicated region
    $region66: #{tpu_custom_call.1} parent=1 // pred_check
      _
    $region67: #{tpu_custom_call.1} parent=1 // pred_check_branch
      %125 = sbr.rel (0) target = $region69
    $region68: #{tpu_custom_call.1} parent=1 // pred_region
      %126 = dma.done [#allocation9], 2048
    $region69: #{tpu_custom_call.1} parent=1 // pred_fallthru
      _
    // Predicated region
    $region70: #{tpu_custom_call.1} parent=1 // pred_check
      _
    $region71: #{tpu_custom_call.1} parent=1 // pred_check_branch
      %128 = sbr.rel (0) target = $region73
    $region72: #{tpu_custom_call.1} parent=1 // pred_region
      %129 = dma.done [#allocation12], 2048
    $region73: #{tpu_custom_call.1} parent=1 // pred_fallthru
      _
    %v131 = vld [vmem:[#allocation2] sm:$0xf]
    %v132 = vld [vmem:[#allocation2 + $0x4] sm:$0xf]
    %v133 = vld [vmem:[#allocation5] sm:$0xff]
    %v134 = vld [vmem:[#allocation5 + $0x8] sm:$0xff]
    %v135 = vld [vmem:[#allocation7] sm:$0xf]
    %v136 = vld [vmem:[#allocation7 + $0x4] sm:$0xf]
    %v137 = vld [vmem:[#allocation7 + $0x8] sm:$0xf]
    %v138 = vld [vmem:[#allocation7 + $0xc] sm:$0xf]
    %v139 = vld [vmem:[#allocation7 + $0x10] sm:$0xf]
    %v140 = vld [vmem:[#allocation7 + $0x14] sm:$0xf]
    %v141 = vld [vmem:[#allocation7 + $0x18] sm:$0xf]
    %v142 = vld [vmem:[#allocation7 + $0x1c] sm:$0xf]
    %v143 = vld [vmem:[#allocation7 + $0x20] sm:$0xf]
    %v144 = vld [vmem:[#allocation7 + $0x24] sm:$0xf]
    %v145 = vld [vmem:[#allocation7 + $0x28] sm:$0xf]
    %v146 = vld [vmem:[#allocation7 + $0x2c] sm:$0xf]
    %v147 = vld [vmem:[#allocation7 + $0x30] sm:$0xf]
    %v148 = vld [vmem:[#allocation7 + $0x34] sm:$0xf]
    %v149 = vld [vmem:[#allocation7 + $0x38] sm:$0xf]
    %v150 = vld [vmem:[#allocation7 + $0x3c] sm:$0xf]
    %v151 = vld [vmem:[%s3] sm:$0x1]
    %v152 = vld [vmem:[#allocation8] sm:$0xf]
    %v153 = vld [vmem:[#allocation8 + $0x4] sm:$0xf]
    %v154 = vld [vmem:[#allocation8 + $0x8] sm:$0xf]
    %v155 = vld [vmem:[#allocation8 + $0xc] sm:$0xf]
    %v156 = vld [vmem:[#allocation8 + $0x10] sm:$0xf]
    %v157 = vld [vmem:[#allocation8 + $0x14] sm:$0xf]
    %v158 = vld [vmem:[#allocation8 + $0x18] sm:$0xf]
    %v159 = vld [vmem:[#allocation8 + $0x1c] sm:$0xf]
    %v160 = vld [vmem:[#allocation8 + $0x20] sm:$0xf]
    %v161 = vld [vmem:[#allocation8 + $0x24] sm:$0xf]
    %v162 = vld [vmem:[#allocation8 + $0x28] sm:$0xf]
    %v163 = vld [vmem:[#allocation8 + $0x2c] sm:$0xf]
    %v164 = vld [vmem:[#allocation8 + $0x30] sm:$0xf]
    %v165 = vld [vmem:[#allocation8 + $0x34] sm:$0xf]
    %v166 = vld [vmem:[#allocation8 + $0x38] sm:$0xf]
    %v167 = vld [vmem:[#allocation8 + $0x3c] sm:$0xf]
    %v168 = vld [vmem:[#allocation8 + $0x40] sm:$0xf]
    %v169 = vld [vmem:[#allocation8 + $0x44] sm:$0xf]
    %v170 = vld [vmem:[#allocation8 + $0x48] sm:$0xf]
    %v171 = vld [vmem:[#allocation8 + $0x4c] sm:$0xf]
    %v172 = vld [vmem:[#allocation8 + $0x50] sm:$0xf]
    %v173 = vld [vmem:[#allocation8 + $0x54] sm:$0xf]
    %v174 = vld [vmem:[#allocation8 + $0x58] sm:$0xf]
    %v175 = vld [vmem:[#allocation8 + $0x5c] sm:$0xf]
    %v176 = vld [vmem:[#allocation8 + $0x60] sm:$0xf]
    %v177 = vld [vmem:[#allocation8 + $0x64] sm:$0xf]
    %v178 = vld [vmem:[#allocation8 + $0x68] sm:$0xf]
    %v179 = vld [vmem:[#allocation8 + $0x6c] sm:$0xf]
    %v180 = vld [vmem:[#allocation8 + $0x70] sm:$0xf]
    %v181 = vld [vmem:[#allocation8 + $0x74] sm:$0xf]
    %v182 = vld [vmem:[#allocation8 + $0x78] sm:$0xf]
    %v183 = vld [vmem:[#allocation8 + $0x7c] sm:$0xf]
    %v184 = vld [vmem:[%s5] sm:$0x1]
    %v185 = vld [vmem:[#allocation10] sm:$0xf]
    %v186 = vld [vmem:[#allocation10 + $0x4] sm:$0xf]
    %v187 = vld [vmem:[#allocation10 + $0x8] sm:$0xf]
    %v188 = vld [vmem:[#allocation10 + $0xc] sm:$0xf]
    %v189 = vld [vmem:[#allocation10 + $0x10] sm:$0xf]
    %v190 = vld [vmem:[#allocation10 + $0x14] sm:$0xf]
    %v191 = vld [vmem:[#allocation10 + $0x18] sm:$0xf]
    %v192 = vld [vmem:[#allocation10 + $0x1c] sm:$0xf]
    %v193 = vld [vmem:[#allocation10 + $0x20] sm:$0xf]
    %v194 = vld [vmem:[#allocation10 + $0x24] sm:$0xf]
    %v195 = vld [vmem:[#allocation10 + $0x28] sm:$0xf]
    %v196 = vld [vmem:[#allocation10 + $0x2c] sm:$0xf]
    %v197 = vld [vmem:[#allocation10 + $0x30] sm:$0xf]
    %v198 = vld [vmem:[#allocation10 + $0x34] sm:$0xf]
    %v199 = vld [vmem:[#allocation10 + $0x38] sm:$0xf]
    %v200 = vld [vmem:[#allocation10 + $0x3c] sm:$0xf]
    %v201 = vld [vmem:[#allocation10 + $0x40] sm:$0xf]
    %v202 = vld [vmem:[#allocation10 + $0x44] sm:$0xf]
    %v203 = vld [vmem:[#allocation10 + $0x48] sm:$0xf]
    %v204 = vld [vmem:[#allocation10 + $0x4c] sm:$0xf]
    %v205 = vld [vmem:[#allocation10 + $0x50] sm:$0xf]
    %v206 = vld [vmem:[#allocation10 + $0x54] sm:$0xf]
    %v207 = vld [vmem:[#allocation10 + $0x58] sm:$0xf]
    %v208 = vld [vmem:[#allocation10 + $0x5c] sm:$0xf]
    %v209 = vld [vmem:[#allocation10 + $0x60] sm:$0xf]
    %v210 = vld [vmem:[#allocation10 + $0x64] sm:$0xf]
    %v211 = vld [vmem:[#allocation10 + $0x68] sm:$0xf]
    %v212 = vld [vmem:[#allocation10 + $0x6c] sm:$0xf]
    %v213 = vld [vmem:[#allocation10 + $0x70] sm:$0xf]
    %v214 = vld [vmem:[#allocation10 + $0x74] sm:$0xf]
    %v215 = vld [vmem:[#allocation10 + $0x78] sm:$0xf]
    %v216 = vld [vmem:[#allocation10 + $0x7c] sm:$0xf]
    %v217 = vld [vmem:[%s7] sm:$0x1]
    %v218 = vld [vmem:[#allocation11] sm:$0xf]
    %v219 = vld [vmem:[#allocation11 + $0x4] sm:$0xf]
    %v220 = vld [vmem:[#allocation11 + $0x8] sm:$0xf]
    %v221 = vld [vmem:[#allocation11 + $0xc] sm:$0xf]
    %v222 = vld [vmem:[#allocation11 + $0x10] sm:$0xf]
    %v223 = vld [vmem:[#allocation11 + $0x14] sm:$0xf]
    %v224 = vld [vmem:[#allocation11 + $0x18] sm:$0xf]
    %v225 = vld [vmem:[#allocation11 + $0x1c] sm:$0xf]
    %v226 = vld [vmem:[#allocation11 + $0x20] sm:$0xf]
    %v227 = vld [vmem:[#allocation11 + $0x24] sm:$0xf]
    %v228 = vld [vmem:[#allocation11 + $0x28] sm:$0xf]
    %v229 = vld [vmem:[#allocation11 + $0x2c] sm:$0xf]
    %v230 = vld [vmem:[#allocation11 + $0x30] sm:$0xf]
    %v231 = vld [vmem:[#allocation11 + $0x34] sm:$0xf]
    %v232 = vld [vmem:[#allocation11 + $0x38] sm:$0xf]
    %v233 = vld [vmem:[#allocation11 + $0x3c] sm:$0xf]
    %v234 = vld [vmem:[#allocation11 + $0x40] sm:$0xf]
    %v235 = vld [vmem:[#allocation11 + $0x44] sm:$0xf]
    %v236 = vld [vmem:[#allocation11 + $0x48] sm:$0xf]
    %v237 = vld [vmem:[#allocation11 + $0x4c] sm:$0xf]
    %v238 = vld [vmem:[#allocation11 + $0x50] sm:$0xf]
    %v239 = vld [vmem:[#allocation11 + $0x54] sm:$0xf]
    %v240 = vld [vmem:[#allocation11 + $0x58] sm:$0xf]
    %v241 = vld [vmem:[#allocation11 + $0x5c] sm:$0xf]
    %v242 = vld [vmem:[#allocation11 + $0x60] sm:$0xf]
    %v243 = vld [vmem:[#allocation11 + $0x64] sm:$0xf]
    %v244 = vld [vmem:[#allocation11 + $0x68] sm:$0xf]
    %v245 = vld [vmem:[#allocation11 + $0x6c] sm:$0xf]
    %v246 = vld [vmem:[#allocation11 + $0x70] sm:$0xf]
    %v247 = vld [vmem:[#allocation11 + $0x74] sm:$0xf]
    %v248 = vld [vmem:[#allocation11 + $0x78] sm:$0xf]
    %v249 = vld [vmem:[#allocation11 + $0x7c] sm:$0xf]
    %v250 = vld [vmem:[%s9] sm:$0x1]
    %v251 = vld [vmem:[%s10] sm:$0x1]
    %v252 = vld [vmem:[%s11] sm:$0x1]
    %v253 = vpack.c.bf16 %v134, %v133
    %v255 = vlaneseq
    %v256 = vshrl.u32 %v255, 7
    %v257 = vsub.s32 0, %v256
    %v258 = vrot.slane %v151, %v257
    %v276 = vunpack.c.l.b16 %v135
    %v277 = vunpack.c.l.b16 %v136
    %v278 = vunpack.c.l.b16 %v137
    %v279 = vunpack.c.l.b16 %v138
    %v280 = vunpack.c.l.b16 %v139
    %v281 = vunpack.c.l.b16 %v140
    %v282 = vunpack.c.l.b16 %v141
    %v283 = vunpack.c.l.b16 %v142
    %v284 = vunpack.c.l.b16 %v143
    %v285 = vunpack.c.l.b16 %v144
    %v286 = vunpack.c.l.b16 %v145
    %v287 = vunpack.c.l.b16 %v146
    %v288 = vunpack.c.l.b16 %v147
    %v289 = vunpack.c.l.b16 %v148
    %v290 = vunpack.c.l.b16 %v149
    %v291 = vunpack.c.l.b16 %v150
    %v292 = vpack.c.b16 %v277, %v276
    %v293 = vpack.c.b16 %v279, %v278
    %v294 = vpack.c.b16 %v281, %v280
    %v295 = vpack.c.b16 %v283, %v282
    %v296 = vpack.c.b16 %v285, %v284
    %v297 = vpack.c.b16 %v287, %v286
    %v298 = vpack.c.b16 %v289, %v288
    %v299 = vpack.c.b16 %v291, %v290
    %308 = vmatprep.subr.bf16.mxu0 0
    %309 = vmatpush1.bf16.msra.mxu0 %v299
    %310 = vmatprep.subr.bf16.mxu0 0
    %311 = vmatpush1.bf16.msra.mxu0 %v298
    %312 = vmatprep.subr.bf16.mxu0 0
    %313 = vmatpush1.bf16.msra.mxu0 %v297
    %314 = vmatprep.subr.bf16.mxu0 0
    %315 = vmatpush1.bf16.msra.mxu0 %v296
    %316 = vmatprep.subr.bf16.mxu0 0
    %317 = vmatpush1.bf16.msra.mxu0 %v295
    %318 = vmatprep.subr.bf16.mxu0 0
    %319 = vmatpush1.bf16.msra.mxu0 %v294
    %320 = vmatprep.subr.bf16.mxu0 0
    %321 = vmatpush1.bf16.msra.mxu0 %v293
    %322 = vmatprep.subr.bf16.mxu0 0
    %323 = vmatpush1.bf16.msra.mxu0 %v292
    %324 = vmatprep.subr.bf16.mxu0 0
    %325 = vmatpush2.bf16.msra.mxu0 0
    %326 = vmatprep.subr.bf16.mxu0 0
    %327 = vmatpush2.bf16.msra.mxu0 0
    %328 = vmatprep.subr.bf16.mxu0 0
    %329 = vmatpush2.bf16.msra.mxu0 0
    %330 = vmatprep.subr.bf16.mxu0 0
    %331 = vmatpush2.bf16.msra.mxu0 0
    %332 = vmatprep.subr.bf16.mxu0 0
    %333 = vmatpush2.bf16.msra.mxu0 0
    %334 = vmatprep.subr.bf16.mxu0 0
    %335 = vmatpush2.bf16.msra.mxu0 0
    %336 = vmatprep.subr.bf16.mxu0 0
    %337 = vmatpush2.bf16.msra.mxu0 0
    %338 = vmatprep.subr.bf16.mxu0 0
    %339 = vmatpush2.bf16.msra.mxu0 0
    %340 = vmatprep.mubr.bf16.mxu0 0
    %341 = vmatmul.mubr.bf16.gmra.mxu0 %v253
    %v342 = vpop.f32.mrf.mxu0
    %v343 = vadd.f32 %v258, %v342
    %v344 = vpop.f32.mrf.mxu0
    %v345 = vpop.f32.mrf.mxu0
    %v346 = vadd.f32 %v258, %v345
    %v347 = vpop.f32.mrf.mxu0
    %348 = vdwg.mxu0
    %v351 = vunpack.c.l.b16 %v131
    %v352 = vunpack.c.l.b16 %v132
    %v353 = vpack.c.b16 %v352, %v351
    %vm354 = vcmask 130048
    %v356 = vsel %vm354, %v353, 0
    %358 = vmatprep.subr.bf16.mxu0 0
    %359 = vmatpush1.bf16.msra.mxu0 0
    %360 = vmatprep.subr.bf16.mxu0 0
    %361 = vmatpush1.bf16.msra.mxu0 0
    %362 = vmatprep.subr.bf16.mxu0 0
    %363 = vmatpush1.bf16.msra.mxu0 0
    %364 = vmatprep.subr.bf16.mxu0 0
    %365 = vmatpush1.bf16.msra.mxu0 0
    %366 = vmatprep.subr.bf16.mxu0 0
    %367 = vmatpush1.bf16.msra.mxu0 0
    %368 = vmatprep.subr.bf16.mxu0 0
    %369 = vmatpush1.bf16.msra.mxu0 0
    %370 = vmatprep.subr.bf16.mxu0 0
    %371 = vmatpush1.bf16.msra.mxu0 0
    %372 = vmatprep.subr.bf16.mxu0 0
    %373 = vmatpush1.bf16.msra.mxu0 %v253
    %374 = vmatprep.subr.bf16.mxu0 0
    %375 = vmatpush2.bf16.msra.mxu0 0
    %376 = vmatprep.subr.bf16.mxu0 0
    %377 = vmatpush2.bf16.msra.mxu0 0
    %378 = vmatprep.subr.bf16.mxu0 0
    %379 = vmatpush2.bf16.msra.mxu0 0
    %380 = vmatprep.subr.bf16.mxu0 0
    %381 = vmatpush2.bf16.msra.mxu0 0
    %382 = vmatprep.subr.bf16.mxu0 0
    %383 = vmatpush2.bf16.msra.mxu0 0
    %384 = vmatprep.subr.bf16.mxu0 0
    %385 = vmatpush2.bf16.msra.mxu0 0
    %386 = vmatprep.subr.bf16.mxu0 0
    %387 = vmatpush2.bf16.msra.mxu0 0
    %388 = vmatprep.subr.bf16.mxu0 0
    %389 = vmatpush2.bf16.msra.mxu0 0
    %390 = vmatprep.mubr.bf16.mxu0 0
    %391 = vmatmul.mubr.bf16.gmra.mxu0 %v356
    %v392 = vpop.f32.mrf.mxu0
    %v393 = vadd.f32 0.0, %v392
    %v394 = vpop.f32.mrf.mxu0
    %v395 = vpop.f32.mrf.mxu0
    %v396 = vadd.f32 0.0, %v395
    %v397 = vpop.f32.mrf.mxu0
    %398 = vdwg.mxu0
    %v399 = vpack.c.bf16 %v396, %v393
    %v401 = vlaneseq
    %v402 = vshrl.u32 %v401, 7
    %v403 = vsub.s32 0, %v402
    %v404 = vrot.slane %v184, %v403
    %v438 = vunpack.c.l.b16 %v152
    %v439 = vunpack.c.l.b16 %v153
    %v440 = vunpack.c.l.b16 %v154
    %v441 = vunpack.c.l.b16 %v155
    %v442 = vunpack.c.l.b16 %v156
    %v443 = vunpack.c.l.b16 %v157
    %v444 = vunpack.c.l.b16 %v158
    %v445 = vunpack.c.l.b16 %v159
    %v446 = vunpack.c.l.b16 %v160
    %v447 = vunpack.c.l.b16 %v161
    %v448 = vunpack.c.l.b16 %v162
    %v449 = vunpack.c.l.b16 %v163
    %v450 = vunpack.c.l.b16 %v164
    %v451 = vunpack.c.l.b16 %v165
    %v452 = vunpack.c.l.b16 %v166
    %v453 = vunpack.c.l.b16 %v167
    %v454 = vunpack.c.l.b16 %v168
    %v455 = vunpack.c.l.b16 %v169
    %v456 = vunpack.c.l.b16 %v170
    %v457 = vunpack.c.l.b16 %v171
    %v458 = vunpack.c.l.b16 %v172
    %v459 = vunpack.c.l.b16 %v173
    %v460 = vunpack.c.l.b16 %v174
    %v461 = vunpack.c.l.b16 %v175
    %v462 = vunpack.c.l.b16 %v176
    %v463 = vunpack.c.l.b16 %v177
    %v464 = vunpack.c.l.b16 %v178
    %v465 = vunpack.c.l.b16 %v179
    %v466 = vunpack.c.l.b16 %v180
    %v467 = vunpack.c.l.b16 %v181
    %v468 = vunpack.c.l.b16 %v182
    %v469 = vunpack.c.l.b16 %v183
    %v470 = vpack.c.b16 %v439, %v438
    %v471 = vpack.c.b16 %v441, %v440
    %v472 = vpack.c.b16 %v443, %v442
    %v473 = vpack.c.b16 %v445, %v444
    %v474 = vpack.c.b16 %v447, %v446
    %v475 = vpack.c.b16 %v449, %v448
    %v476 = vpack.c.b16 %v451, %v450
    %v477 = vpack.c.b16 %v453, %v452
    %v478 = vpack.c.b16 %v455, %v454
    %v479 = vpack.c.b16 %v457, %v456
    %v480 = vpack.c.b16 %v459, %v458
    %v481 = vpack.c.b16 %v461, %v460
    %v482 = vpack.c.b16 %v463, %v462
    %v483 = vpack.c.b16 %v465, %v464
    %v484 = vpack.c.b16 %v467, %v466
    %v485 = vpack.c.b16 %v469, %v468
    %502 = vmatprep.subr.bf16.mxu0 0
    %503 = vmatpush1.bf16.msra.mxu0 %v477
    %504 = vmatprep.subr.bf16.mxu0 0
    %505 = vmatpush1.bf16.msra.mxu0 %v476
    %506 = vmatprep.subr.bf16.mxu0 0
    %507 = vmatpush1.bf16.msra.mxu0 %v475
    %508 = vmatprep.subr.bf16.mxu0 0
    %509 = vmatpush1.bf16.msra.mxu0 %v474
    %510 = vmatprep.subr.bf16.mxu0 0
    %511 = vmatpush1.bf16.msra.mxu0 %v473
    %512 = vmatprep.subr.bf16.mxu0 0
    %513 = vmatpush1.bf16.msra.mxu0 %v472
    %514 = vmatprep.subr.bf16.mxu0 0
    %515 = vmatpush1.bf16.msra.mxu0 %v471
    %516 = vmatprep.subr.bf16.mxu0 0
    %517 = vmatpush1.bf16.msra.mxu0 %v470
    %518 = vmatprep.subr.bf16.mxu0 0
    %519 = vmatpush2.bf16.msra.mxu0 %v485
    %520 = vmatprep.subr.bf16.mxu0 0
    %521 = vmatpush2.bf16.msra.mxu0 %v484
    %522 = vmatprep.subr.bf16.mxu0 0
    %523 = vmatpush2.bf16.msra.mxu0 %v483
    %524 = vmatprep.subr.bf16.mxu0 0
    %525 = vmatpush2.bf16.msra.mxu0 %v482
    %526 = vmatprep.subr.bf16.mxu0 0
    %527 = vmatpush2.bf16.msra.mxu0 %v481
    %528 = vmatprep.subr.bf16.mxu0 0
    %529 = vmatpush2.bf16.msra.mxu0 %v480
    %530 = vmatprep.subr.bf16.mxu0 0
    %531 = vmatpush2.bf16.msra.mxu0 %v479
    %532 = vmatprep.subr.bf16.mxu0 0
    %533 = vmatpush2.bf16.msra.mxu0 %v478
    %534 = vmatprep.mubr.bf16.mxu0 %v253
    %535 = vmatmul.mubr.bf16.gmra.mxu0 %v399
    %v536 = vpop.f32.mrf.mxu0
    %v537 = vadd.f32 %v404, %v536
    %v538 = vpop.f32.mrf.mxu0
    %v539 = vpop.f32.mrf.mxu0
    %v540 = vadd.f32 %v404, %v539
    %v541 = vpop.f32.mrf.mxu0
    %542 = vdwg.mxu0
    %v543 = vmax.f32 %v537, 0.0
    %v544 = vmax.f32 %v540, 0.0
    %545 = vst [vmem:[#allocation13] sm:$0xff] %v543
    %546 = vst [vmem:[#allocation13 + $0x8] sm:$0xff] %v544
    %v547 = vpack.c.bf16 %v544, %v543
    %548 = vmatprep.subr.bf16.mxu0 0
    %549 = vmatpush1.bf16.msra.mxu0 0
    %550 = vmatprep.subr.bf16.mxu0 0
    %551 = vmatpush1.bf16.msra.mxu0 0
    %552 = vmatprep.subr.bf16.mxu0 0
    %553 = vmatpush1.bf16.msra.mxu0 0
    %554 = vmatprep.subr.bf16.mxu0 0
    %555 = vmatpush1.bf16.msra.mxu0 0
    %556 = vmatprep.subr.bf16.mxu0 0
    %557 = vmatpush1.bf16.msra.mxu0 0
    %558 = vmatprep.subr.bf16.mxu0 0
    %559 = vmatpush1.bf16.msra.mxu0 0
    %560 = vmatprep.subr.bf16.mxu0 0
    %561 = vmatpush1.bf16.msra.mxu0 0
    %562 = vmatprep.subr.bf16.mxu0 0
    %563 = vmatpush1.bf16.msra.mxu0 %v547
    %564 = vmatprep.subr.bf16.mxu0 0
    %565 = vmatpush2.bf16.msra.mxu0 0
    %566 = vmatprep.subr.bf16.mxu0 0
    %567 = vmatpush2.bf16.msra.mxu0 0
    %568 = vmatprep.subr.bf16.mxu0 0
    %569 = vmatpush2.bf16.msra.mxu0 0
    %570 = vmatprep.subr.bf16.mxu0 0
    %571 = vmatpush2.bf16.msra.mxu0 0
    %572 = vmatprep.subr.bf16.mxu0 0
    %573 = vmatpush2.bf16.msra.mxu0 0
    %574 = vmatprep.subr.bf16.mxu0 0
    %575 = vmatpush2.bf16.msra.mxu0 0
    %576 = vmatprep.subr.bf16.mxu0 0
    %577 = vmatpush2.bf16.msra.mxu0 0
    %578 = vmatprep.subr.bf16.mxu0 0
    %579 = vmatpush2.bf16.msra.mxu0 0
    %580 = vmatprep.mubr.bf16.mxu0 0
    %581 = vmatmul.mubr.bf16.gmra.mxu0 %v356
    %v582 = vpop.f32.mrf.mxu0
    %v583 = vadd.f32 0.0, %v582
    %v584 = vpop.f32.mrf.mxu0
    %v585 = vpop.f32.mrf.mxu0
    %v586 = vadd.f32 0.0, %v585
    %v587 = vpop.f32.mrf.mxu0
    %588 = vdwg.mxu0
    %v589 = vpack.c.bf16 %v586, %v583
    %v591 = vlaneseq
    %v592 = vshrl.u32 %v591, 7
    %v593 = vsub.s32 0, %v592
    %v594 = vrot.slane %v217, %v593
    %v628 = vunpack.c.l.b16 %v185
    %v629 = vunpack.c.l.b16 %v186
    %v630 = vunpack.c.l.b16 %v187
    %v631 = vunpack.c.l.b16 %v188
    %v632 = vunpack.c.l.b16 %v189
    %v633 = vunpack.c.l.b16 %v190
    %v634 = vunpack.c.l.b16 %v191
    %v635 = vunpack.c.l.b16 %v192
    %v636 = vunpack.c.l.b16 %v193
    %v637 = vunpack.c.l.b16 %v194
    %v638 = vunpack.c.l.b16 %v195
    %v639 = vunpack.c.l.b16 %v196
    %v640 = vunpack.c.l.b16 %v197
    %v641 = vunpack.c.l.b16 %v198
    %v642 = vunpack.c.l.b16 %v199
    %v643 = vunpack.c.l.b16 %v200
    %v644 = vunpack.c.l.b16 %v201
    %v645 = vunpack.c.l.b16 %v202
    %v646 = vunpack.c.l.b16 %v203
    %v647 = vunpack.c.l.b16 %v204
    %v648 = vunpack.c.l.b16 %v205
    %v649 = vunpack.c.l.b16 %v206
    %v650 = vunpack.c.l.b16 %v207
    %v651 = vunpack.c.l.b16 %v208
    %v652 = vunpack.c.l.b16 %v209
    %v653 = vunpack.c.l.b16 %v210
    %v654 = vunpack.c.l.b16 %v211
    %v655 = vunpack.c.l.b16 %v212
    %v656 = vunpack.c.l.b16 %v213
    %v657 = vunpack.c.l.b16 %v214
    %v658 = vunpack.c.l.b16 %v215
    %v659 = vunpack.c.l.b16 %v216
    %v660 = vpack.c.b16 %v629, %v628
    %v661 = vpack.c.b16 %v631, %v630
    %v662 = vpack.c.b16 %v633, %v632
    %v663 = vpack.c.b16 %v635, %v634
    %v664 = vpack.c.b16 %v637, %v636
    %v665 = vpack.c.b16 %v639, %v638
    %v666 = vpack.c.b16 %v641, %v640
    %v667 = vpack.c.b16 %v643, %v642
    %v668 = vpack.c.b16 %v645, %v644
    %v669 = vpack.c.b16 %v647, %v646
    %v670 = vpack.c.b16 %v649, %v648
    %v671 = vpack.c.b16 %v651, %v650
    %v672 = vpack.c.b16 %v653, %v652
    %v673 = vpack.c.b16 %v655, %v654
    %v674 = vpack.c.b16 %v657, %v656
    %v675 = vpack.c.b16 %v659, %v658
    %692 = vmatprep.subr.bf16.mxu0 0
    %693 = vmatpush1.bf16.msra.mxu0 %v667
    %694 = vmatprep.subr.bf16.mxu0 0
    %695 = vmatpush1.bf16.msra.mxu0 %v666
    %696 = vmatprep.subr.bf16.mxu0 0
    %697 = vmatpush1.bf16.msra.mxu0 %v665
    %698 = vmatprep.subr.bf16.mxu0 0
    %699 = vmatpush1.bf16.msra.mxu0 %v664
    %700 = vmatprep.subr.bf16.mxu0 0
    %701 = vmatpush1.bf16.msra.mxu0 %v663
    %702 = vmatprep.subr.bf16.mxu0 0
    %703 = vmatpush1.bf16.msra.mxu0 %v662
    %704 = vmatprep.subr.bf16.mxu0 0
    %705 = vmatpush1.bf16.msra.mxu0 %v661
    %706 = vmatprep.subr.bf16.mxu0 0
    %707 = vmatpush1.bf16.msra.mxu0 %v660
    %708 = vmatprep.subr.bf16.mxu0 0
    %709 = vmatpush2.bf16.msra.mxu0 %v675
    %710 = vmatprep.subr.bf16.mxu0 0
    %711 = vmatpush2.bf16.msra.mxu0 %v674
    %712 = vmatprep.subr.bf16.mxu0 0
    %713 = vmatpush2.bf16.msra.mxu0 %v673
    %714 = vmatprep.subr.bf16.mxu0 0
    %715 = vmatpush2.bf16.msra.mxu0 %v672
    %716 = vmatprep.subr.bf16.mxu0 0
    %717 = vmatpush2.bf16.msra.mxu0 %v671
    %718 = vmatprep.subr.bf16.mxu0 0
    %719 = vmatpush2.bf16.msra.mxu0 %v670
    %720 = vmatprep.subr.bf16.mxu0 0
    %721 = vmatpush2.bf16.msra.mxu0 %v669
    %722 = vmatprep.subr.bf16.mxu0 0
    %723 = vmatpush2.bf16.msra.mxu0 %v668
    %724 = vmatprep.mubr.bf16.mxu0 %v547
    %725 = vmatmul.mubr.bf16.gmra.mxu0 %v589
    %v726 = vpop.f32.mrf.mxu0
    %v727 = vadd.f32 %v594, %v726
    %v728 = vpop.f32.mrf.mxu0
    %v729 = vpop.f32.mrf.mxu0
    %v730 = vadd.f32 %v594, %v729
    %v731 = vpop.f32.mrf.mxu0
    %732 = vdwg.mxu0
    %v734 = vlaneseq
    %v735 = vshrl.u32 %v734, 7
    %v736 = vsub.s32 0, %v735
    %v737 = vrot.slane %v251, %v736
    %v739 = vmul.f32 %v727, %v737
    %v740 = vmul.f32 %v730, %v737
    %v742 = vlaneseq
    %v743 = vshrl.u32 %v742, 7
    %v744 = vsub.s32 0, %v743
    %v745 = vrot.slane %v252, %v744
    %v747 = vadd.f32 %v739, %v745
    %v748 = vadd.f32 %v740, %v745
    %v749 = vmax.f32 %v747, 0.0
    %v750 = vmax.f32 %v748, 0.0
    %v751 = vadd.f32 %v749, %v343
    %v752 = vadd.f32 %v750, %v346
    %753 = vst [vmem:[#allocation14] sm:$0xff] %v751
    %754 = vst [vmem:[#allocation14 + $0x8] sm:$0xff] %v752
    %v755 = vpack.c.bf16 %v752, %v751
    %756 = vmatprep.subr.bf16.mxu0 0
    %757 = vmatpush1.bf16.msra.mxu0 0
    %758 = vmatprep.subr.bf16.mxu0 0
    %759 = vmatpush1.bf16.msra.mxu0 0
    %760 = vmatprep.subr.bf16.mxu0 0
    %761 = vmatpush1.bf16.msra.mxu0 0
    %762 = vmatprep.subr.bf16.mxu0 0
    %763 = vmatpush1.bf16.msra.mxu0 0
    %764 = vmatprep.subr.bf16.mxu0 0
    %765 = vmatpush1.bf16.msra.mxu0 0
    %766 = vmatprep.subr.bf16.mxu0 0
    %767 = vmatpush1.bf16.msra.mxu0 0
    %768 = vmatprep.subr.bf16.mxu0 0
    %769 = vmatpush1.bf16.msra.mxu0 0
    %770 = vmatprep.subr.bf16.mxu0 0
    %771 = vmatpush1.bf16.msra.mxu0 %v755
    %772 = vmatprep.subr.bf16.mxu0 0
    %773 = vmatpush2.bf16.msra.mxu0 0
    %774 = vmatprep.subr.bf16.mxu0 0
    %775 = vmatpush2.bf16.msra.mxu0 0
    %776 = vmatprep.subr.bf16.mxu0 0
    %777 = vmatpush2.bf16.msra.mxu0 0
    %778 = vmatprep.subr.bf16.mxu0 0
    %779 = vmatpush2.bf16.msra.mxu0 0
    %780 = vmatprep.subr.bf16.mxu0 0
    %781 = vmatpush2.bf16.msra.mxu0 0
    %782 = vmatprep.subr.bf16.mxu0 0
    %783 = vmatpush2.bf16.msra.mxu0 0
    %784 = vmatprep.subr.bf16.mxu0 0
    %785 = vmatpush2.bf16.msra.mxu0 0
    %786 = vmatprep.subr.bf16.mxu0 0
    %787 = vmatpush2.bf16.msra.mxu0 0
    %788 = vmatprep.mubr.bf16.mxu0 0
    %789 = vmatmul.mubr.bf16.gmra.mxu0 %v356
    %v790 = vpop.f32.mrf.mxu0
    %v791 = vadd.f32 0.0, %v790
    %v792 = vpop.f32.mrf.mxu0
    %v793 = vpop.f32.mrf.mxu0
    %v794 = vadd.f32 0.0, %v793
    %v795 = vpop.f32.mrf.mxu0
    %796 = vdwg.mxu0
    %v797 = vpack.c.bf16 %v794, %v791
    %v799 = vlaneseq
    %v800 = vshrl.u32 %v799, 7
    %v801 = vsub.s32 0, %v800
    %v802 = vrot.slane %v250, %v801
    %v836 = vunpack.c.l.b16 %v218
    %v837 = vunpack.c.l.b16 %v219
    %v838 = vunpack.c.l.b16 %v220
    %v839 = vunpack.c.l.b16 %v221
    %v840 = vunpack.c.l.b16 %v222
    %v841 = vunpack.c.l.b16 %v223
    %v842 = vunpack.c.l.b16 %v224
    %v843 = vunpack.c.l.b16 %v225
    %v844 = vunpack.c.l.b16 %v226
    %v845 = vunpack.c.l.b16 %v227
    %v846 = vunpack.c.l.b16 %v228
    %v847 = vunpack.c.l.b16 %v229
    %v848 = vunpack.c.l.b16 %v230
    %v849 = vunpack.c.l.b16 %v231
    %v850 = vunpack.c.l.b16 %v232
    %v851 = vunpack.c.l.b16 %v233
    %v852 = vunpack.c.l.b16 %v234
    %v853 = vunpack.c.l.b16 %v235
    %v854 = vunpack.c.l.b16 %v236
    %v855 = vunpack.c.l.b16 %v237
    %v856 = vunpack.c.l.b16 %v238
    %v857 = vunpack.c.l.b16 %v239
    %v858 = vunpack.c.l.b16 %v240
    %v859 = vunpack.c.l.b16 %v241
    %v860 = vunpack.c.l.b16 %v242
    %v861 = vunpack.c.l.b16 %v243
    %v862 = vunpack.c.l.b16 %v244
    %v863 = vunpack.c.l.b16 %v245
    %v864 = vunpack.c.l.b16 %v246
    %v865 = vunpack.c.l.b16 %v247
    %v866 = vunpack.c.l.b16 %v248
    %v867 = vunpack.c.l.b16 %v249
    %v868 = vpack.c.b16 %v837, %v836
    %v869 = vpack.c.b16 %v839, %v838
    %v870 = vpack.c.b16 %v841, %v840
    %v871 = vpack.c.b16 %v843, %v842
    %v872 = vpack.c.b16 %v845, %v844
    %v873 = vpack.c.b16 %v847, %v846
    %v874 = vpack.c.b16 %v849, %v848
    %v875 = vpack.c.b16 %v851, %v850
    %v876 = vpack.c.b16 %v853, %v852
    %v877 = vpack.c.b16 %v855, %v854
    %v878 = vpack.c.b16 %v857, %v856
    %v879 = vpack.c.b16 %v859, %v858
    %v880 = vpack.c.b16 %v861, %v860
    %v881 = vpack.c.b16 %v863, %v862
    %v882 = vpack.c.b16 %v865, %v864
    %v883 = vpack.c.b16 %v867, %v866
    %900 = vmatprep.subr.bf16.mxu0 0
    %901 = vmatpush1.bf16.msra.mxu0 %v875
    %902 = vmatprep.subr.bf16.mxu0 0
    %903 = vmatpush1.bf16.msra.mxu0 %v874
    %904 = vmatprep.subr.bf16.mxu0 0
    %905 = vmatpush1.bf16.msra.mxu0 %v873
    %906 = vmatprep.subr.bf16.mxu0 0
    %907 = vmatpush1.bf16.msra.mxu0 %v872
    %908 = vmatprep.subr.bf16.mxu0 0
    %909 = vmatpush1.bf16.msra.mxu0 %v871
    %910 = vmatprep.subr.bf16.mxu0 0
    %911 = vmatpush1.bf16.msra.mxu0 %v870
    %912 = vmatprep.subr.bf16.mxu0 0
    %913 = vmatpush1.bf16.msra.mxu0 %v869
    %914 = vmatprep.subr.bf16.mxu0 0
    %915 = vmatpush1.bf16.msra.mxu0 %v868
    %916 = vmatprep.subr.bf16.mxu0 0
    %917 = vmatpush2.bf16.msra.mxu0 %v883
    %918 = vmatprep.subr.bf16.mxu0 0
    %919 = vmatpush2.bf16.msra.mxu0 %v882
    %920 = vmatprep.subr.bf16.mxu0 0
    %921 = vmatpush2.bf16.msra.mxu0 %v881
    %922 = vmatprep.subr.bf16.mxu0 0
    %923 = vmatpush2.bf16.msra.mxu0 %v880
    %924 = vmatprep.subr.bf16.mxu0 0
    %925 = vmatpush2.bf16.msra.mxu0 %v879
    %926 = vmatprep.subr.bf16.mxu0 0
    %927 = vmatpush2.bf16.msra.mxu0 %v878
    %928 = vmatprep.subr.bf16.mxu0 0
    %929 = vmatpush2.bf16.msra.mxu0 %v877
    %930 = vmatprep.subr.bf16.mxu0 0
    %931 = vmatpush2.bf16.msra.mxu0 %v876
    %932 = vmatprep.mubr.bf16.mxu0 %v755
    %933 = vmatmul.mubr.bf16.gmra.mxu0 %v797
    %v934 = vpop.f32.mrf.mxu0
    %v935 = vadd.f32 %v802, %v934
    %v936 = vpop.f32.mrf.mxu0
    %v937 = vpop.f32.mrf.mxu0
    %v938 = vadd.f32 %v802, %v937
    %v939 = vpop.f32.mrf.mxu0
    %940 = vdwg.mxu0
    %941 = vst [vmem:[#allocation16] sm:$0xff] %v935
    %942 = vst [vmem:[#allocation16 + $0x8] sm:$0xff] %v938
    %v943 = vlaneseq
    %v944 = vand.u32 %v943, 127
    %vm945 = vcmp.lt.s32.totalorder %v944, 4
    %v946 = vsel %vm945, %v935, -1e+30
    %v947 = vsel %vm945, %v938, -1e+30
    %948 = vmax.xlane.f32.xlu0 %v946
    %v949 = vpop.xlane.xlu0 %948
    %950 = vmax.xlane.f32.xlu0 %v947
    %v951 = vpop.xlane.xlu0 %950
    %v952 = vsub.f32 %v946, %v949
    %v953 = vsub.f32 %v947, %v951
    %v954 = vmul.f32 %v952, 1.442695
    %v955 = vpow.pop %v954
    %v956 = vmul.f32 %v953, 1.442695
    %v957 = vpow.pop %v956
    %958 = vadd.xlane.f32.xlu0 %v955
    %v959 = vpop.xlane.xlu0 %958
    %960 = vadd.xlane.f32.xlu0 %v957
    %v961 = vpop.xlane.xlu0 %960
    %v962 = vlog2.pop %v959
    %v963 = vmul.f32 %v962, 0.6931472
    %v964 = vlog2.pop %v961
    %v965 = vmul.f32 %v964, 0.6931472
    %v966 = vsub.f32 %v952, %v963
    %v967 = vsub.f32 %v953, %v965
    %968 = vst [vmem:[#allocation17] sm:$0xff] %v966
    %969 = vst [vmem:[#allocation17 + $0x8] sm:$0xff] %v967
    // Predicated region
    $region74: #{tpu_custom_call.1} parent=1 // pred_check
      _
    $region75: #{tpu_custom_call.1} parent=1 // pred_check_branch
      %971 = sbr.rel (0) target = $region77
    $region76: #{tpu_custom_call.1} parent=1 // pred_region
      %s973 = ssub.s32 256, 256
      %974 = vsyncadd [#allocation4], %s973
      %s975 = sshll.u32 [#allocation13], 4
      %s976 = int_to_ptr.vmem [resolvable:$true] %s975
      %981 = dma.vmem_to_hbm [thread:$0]  %s976, 256, %s12, [#allocation4], 128, 128, 8
    $region77: #{tpu_custom_call.1} parent=1 // pred_fallthru
      _
    // Predicated region
    $region78: #{tpu_custom_call.1} parent=1 // pred_check
      _
    $region79: #{tpu_custom_call.1} parent=1 // pred_check_branch
      %983 = sbr.rel (0) target = $region81
    $region80: #{tpu_custom_call.1} parent=1 // pred_region
      %s985 = ssub.s32 256, 256
      %986 = vsyncadd [#allocation15], %s985
      %s987 = sshll.u32 [#allocation14], 4
      %s988 = int_to_ptr.vmem [resolvable:$true] %s987
      %993 = dma.vmem_to_hbm [thread:$0]  %s988, 256, %s13, [#allocation15], 128, 128, 8
    $region81: #{tpu_custom_call.1} parent=1 // pred_fallthru
      _
    // Predicated region
    $region82: #{tpu_custom_call.1} parent=1 // pred_check
      _
    $region83: #{tpu_custom_call.1} parent=1 // pred_check_branch
      %995 = sbr.rel (0) target = $region85
    $region84: #{tpu_custom_call.1} parent=1 // pred_region
      %s997 = ssub.s32 256, 256
      %998 = vsyncadd [#allocation15], %s997
      %s999 = sshll.u32 [#allocation16], 4
      %s1000 = int_to_ptr.vmem [resolvable:$true] %s999
      %1005 = dma.vmem_to_hbm [thread:$0]  %s1000, 256, %s14, [#allocation15], 128, 128, 8
    $region85: #{tpu_custom_call.1} parent=1 // pred_fallthru
      _
    // Predicated region
    $region86: #{tpu_custom_call.1} parent=1 // pred_check
      _
    $region87: #{tpu_custom_call.1} parent=1 // pred_check_branch
      %1007 = sbr.rel (0) target = $region89
    $region88: #{tpu_custom_call.1} parent=1 // pred_region
      %s1009 = ssub.s32 256, 256
      %1010 = vsyncadd [#allocation18], %s1009
      %s1011 = sshll.u32 [#allocation17], 4
      %s1012 = int_to_ptr.vmem [resolvable:$true] %s1011
      %1017 = dma.vmem_to_hbm [thread:$0]  %s1012, 256, %s15, [#allocation18], 128, 128, 8
    $region89: #{tpu_custom_call.1} parent=1 // pred_fallthru
      _
    // Predicated region
    $region90: #{tpu_custom_call.1} parent=1 // pred_check
      _
    $region91: #{tpu_custom_call.1} parent=1 // pred_check_branch
      %1019 = sbr.rel (0) target = $region93
    $region92: #{tpu_custom_call.1} parent=1 // pred_region
      %1020 = dma.done [#allocation4], 256
    $region93: #{tpu_custom_call.1} parent=1 // pred_fallthru
      _
    // Predicated region
    $region94: #{tpu_custom_call.1} parent=1 // pred_check
      _
    $region95: #{tpu_custom_call.1} parent=1 // pred_check_branch
      %1022 = sbr.rel (0) target = $region97
    $region96: #{tpu_custom_call.1} parent=1 // pred_region
      %1023 = dma.done [#allocation15], 256
    $region97: #{tpu_custom_call.1} parent=1 // pred_fallthru
      _
    // Predicated region
    $region98: #{tpu_custom_call.1} parent=1 // pred_check
      _
    $region99: #{tpu_custom_call.1} parent=1 // pred_check_branch
      %1025 = sbr.rel (0) target = $region101
    $region100: #{tpu_custom_call.1} parent=1 // pred_region
      %1026 = dma.done [#allocation15], 256
    $region101: #{tpu_custom_call.1} parent=1 // pred_fallthru
      _
    // Predicated region
    $region102: #{tpu_custom_call.1} parent=1 // pred_check
      _
    $region103: #{tpu_custom_call.1} parent=1 // pred_check_branch
      %1028 = sbr.rel (0) target = $region105
    $region104: #{tpu_custom_call.1} parent=1 // pred_region
      %1029 = dma.done [#allocation18], 256
    $region105: #{tpu_custom_call.1} parent=1 // pred_fallthru
      _
    %1030 = vsyncpa [#allocation3], 1
    %1031 = vsyncpa [#allocation6], 1
    %1032 = vsyncpa [#allocation9], 1
    %1033 = vsyncpa [#allocation12], 1
    %1034 = vsyncpa [#allocation4], 1
    %1035 = vsyncpa [#allocation15], 1
    %1036 = vsyncpa [#allocation18], 1

</llo_original>
